<compile_context>
chip_gen: v5e
topology: v5e:2x2
jax: 0.10.0
libtpu: 0.0.40
codegen_flags: <defaults>
</compile_context>

<pallas_src>
import functools

import jax
import jax.numpy as jnp
import numpy as np
from jax.experimental import pallas as pl
from jax.experimental.pallas import tpu as pltpu


def _conv_bn_relu_kernel(lhs_ref, w_ref, o_ref):
    # lhs_ref: (M, K_pad)  bf16 row-Toeplitz slab (bias lane folded at K_cat)
    # w_ref:   (K_pad, Wc) bf16 banded weight, BN scale + shift folded
    # o_ref:   (M, Wc)     f32 lane-dense output
    y = jnp.dot(lhs_ref[...], w_ref[...], preferred_element_type=jnp.float32)
    o_ref[...] = jnp.maximum(y, 0.0).astype(o_ref.dtype)


def _conv_dims(H, W, KH, KW, stride, padding):
    H_out = (H + 2 * padding - KH) // stride + 1
    W_out = (W + 2 * padding - KW) // stride + 1
    return H_out, W_out, H + 2 * padding, W + 2 * padding


def fold_cnn_block_params(w, b, gamma, beta, run_mean, run_var, *,
                          stride, padding, in_hw, eps=1e-5,
                          compute_dtype=jnp.bfloat16):
    """Precompute the (K_pad, Wc) banded weight with BN scale and shift folded.

    Pure function of the static layer parameters — call once, reuse across
    forward calls (hoisted out of the per-call path per the perf review).
    Layout: W[kh*K_row + wi*C_in + ci, wo*C_out + co]
              = scale[co] * w[co, ci, kh, wi - wo*stride]   (kw in [0, KW))
            W[KH*K_row, wo*C_out + co] = shift[co]          (bias lane)
    """
    C_out, C_in, KH, KW = w.shape
    H, W = in_hw
    _, W_out, _, W_pad = _conv_dims(H, W, KH, KW, stride, padding)
    K_row = W_pad * C_in
    K_cat = KH * K_row
    K_pad = pl.cdiv(K_cat + 1, 128) * 128
    Wc = W_out * C_out

    scale = gamma / jnp.sqrt(run_var + eps)
    shift = beta - run_mean * scale + b * scale

    wt = jnp.transpose(w, (2, 3, 1, 0)).astype(jnp.float32)   # (KH, KW, C_in, C_out)
    wt = wt * scale[None, None, None, :]
    cols = jnp.arange(W_out)
    blocks = []
    for kh in range(KH):
        acc = jnp.zeros((K_row, Wc), jnp.float32)
        for kw in range(KW):
            sel = jnp.zeros((W_pad, W_out), jnp.float32)
            sel = sel.at[cols * stride + kw, cols].set(1.0)
            acc = acc + jnp.kron(sel, wt[kh, kw])
        blocks.append(acc)

    shift_row = jnp.tile(shift, W_out).reshape(1, Wc).astype(jnp.float32)
    pad_rows = jnp.zeros((K_pad - K_cat - 1, Wc), jnp.float32)
    w_mat = jnp.concatenate(blocks + [shift_row, pad_rows], axis=0)
    return w_mat.astype(compute_dtype)


@functools.partial(jax.jit, static_argnames=("kernel_hw", "stride", "padding",
                                              "c_out", "compute_dtype"))
def cnn_block_forward(x_nchw, w_mat, *, kernel_hw, stride, padding, c_out,
                      compute_dtype=jnp.bfloat16):
    N, C_in, H, W = x_nchw.shape
    KH, KW = kernel_hw
    H_out, W_out, H_pad, W_pad = _conv_dims(H, W, KH, KW, stride, padding)
    K_row = W_pad * C_in
    K_cat = KH * K_row
    K_pad = w_mat.shape[0]
    Wc = W_out * c_out
    M = N * H_out                              # MXU rows for the single matmul

    # NCHW -> padded NHWC rows (required by the module's NCHW interface).
    x = jnp.transpose(x_nchw, (0, 2, 3, 1))
    x = jnp.pad(x, ((0, 0), (padding, padding), (padding, padding), (0, 0)))
    x_rows = x.reshape(N, H_pad, K_row)

    # Row-Toeplitz slab: concat the KH taps along the contraction dim so the
    # kernel issues ONE K=K_pad matmul.  Stride is handled here, so the
    # in-kernel load is a contiguous full-block read (no strided sublanes).
    taps = [x_rows[:, kh:kh + (H_out - 1) * stride + 1:stride, :]
            for kh in range(KH)]
    lhs = jnp.concatenate(taps, axis=-1)                       # (N, H_out, K_cat)

    # Fold the BN/bias shift into the existing K padding: lane K_cat is 1.0,
    # the matching weight row carries the shift, remaining pad lanes are 0.
    ones = jnp.ones((N, H_out, 1), lhs.dtype)
    zeros = jnp.zeros((N, H_out, K_pad - K_cat - 1), lhs.dtype)
    lhs = jnp.concatenate([lhs, ones, zeros], axis=-1).astype(compute_dtype)
    lhs = lhs.reshape(M, K_pad)    # merges leading dims only (layout-free)

    out = pl.pallas_call(
        _conv_bn_relu_kernel,
        out_shape=jax.ShapeDtypeStruct((M, Wc), x_nchw.dtype),
        grid_spec=pltpu.PrefetchScalarGridSpec(
            num_scalar_prefetch=0,
            grid=(1,),        # whole batch in one step (overhead-bound size)
            in_specs=[
                pl.BlockSpec((M, K_pad), lambda i: (0, 0)),
                pl.BlockSpec((K_pad, Wc), lambda i: (0, 0)),
            ],
            out_specs=pl.BlockSpec((M, Wc), lambda i: (0, 0)),
        ),
        compiler_params=pltpu.CompilerParams(
            # Single step: no megacore split at this size (per v7x review note).
            dimension_semantics=("arbitrary",)),
    )(lhs, w_mat)

    out = out.reshape(N, H_out, W_out, c_out)
    return jnp.transpose(out, (0, 3, 1, 2))    # back to NCHW (module semantics)


def _reference(x, w, b, gamma, beta, run_mean, run_var, *, stride, padding, eps=1e-5):
    z = jax.lax.conv_general_dilated(
        x, w, window_strides=(stride, stride),
        padding=((padding, padding), (padding, padding)),
        dimension_numbers=("NCHW", "OIHW", "NCHW"))
    z = z + b[None, :, None, None]
    z = (z - run_mean[None, :, None, None]) / jnp.sqrt(run_var + eps)[None, :, None, None]
    z = z * gamma[None, :, None, None] + beta[None, :, None, None]
    return jnp.maximum(z, 0.0)


if __name__ == "__main__":
    # Module config: CNNBlock(in_channels=4, out_channels=8, kernel_size=3,
    #                         stride=1, padding=1), batch=2, spatial=16.
    N, C_in, H, W = 2, 4, 16, 16
    C_out, KH, KW, stride, padding = 8, 3, 3, 1, 1

    key = jax.random.PRNGKey(0)
    k_x, k_w, k_b, k_g, k_be, k_m, k_v = jax.random.split(key, 7)

    x = jax.random.normal(k_x, (N, C_in, H, W), dtype=jnp.float32)
    w = jax.random.normal(k_w, (C_out, C_in, KH, KW), dtype=jnp.float32) * 0.1
    b = jax.random.normal(k_b, (C_out,), dtype=jnp.float32) * 0.1
    gamma = 1.0 + 0.1 * jax.random.normal(k_g, (C_out,), dtype=jnp.float32)
    beta = 0.1 * jax.random.normal(k_be, (C_out,), dtype=jnp.float32)
    run_mean = 0.1 * jax.random.normal(k_m, (C_out,), dtype=jnp.float32)
    run_var = jnp.abs(1.0 + 0.1 * jax.random.normal(k_v, (C_out,), dtype=jnp.float32))

    # Fold static params once (outside the per-call path).
    w_mat = fold_cnn_block_params(w, b, gamma, beta, run_mean, run_var,
                                  stride=stride, padding=padding, in_hw=(H, W))
    w_mat = jax.block_until_ready(w_mat)

    out = cnn_block_forward(x, w_mat, kernel_hw=(KH, KW), stride=stride,
                            padding=padding, c_out=C_out)
    out = jax.block_until_ready(out)

    ref = _reference(x, w, b, gamma, beta, run_mean, run_var,
                     stride=stride, padding=padding)
    # Tolerance accounts for bf16 MXU operands (f32 accumulation / epilogue)
    # and the bf16-quantized folded scale/shift.
    np.testing.assert_allclose(np.asarray(out), np.asarray(ref), rtol=2e-2, atol=2e-2)

    print("KERNEL_OK")
</pallas_src>

<mosaic_0001>
module attributes {stable_mosaic.version = 11 : i64} {
  func.func @_conv_bn_relu_kernel(%arg0: i32, %arg1: memref<32x256xbf16, #tpu.memory_space<vmem>>, %arg2: memref<256x128xbf16, #tpu.memory_space<vmem>>, %arg3: memref<32x128xf32, #tpu.memory_space<vmem>>) attributes {dimension_semantics = [#tpu.dimension_semantics<arbitrary>], iteration_bounds = array<i64: 1>, scalar_prefetch = 0 : i64, scratch_operands = 0 : i64, tpu.core_type = #tpu.core_type<tc>, window_params = [{pipeline_mode = #tpu.pipeline_mode<synchronous>, transform_indices = @transform_0, window_bounds = array<i64: 32, 256>}, {pipeline_mode = #tpu.pipeline_mode<synchronous>, transform_indices = @transform_1, window_bounds = array<i64: 256, 128>}, {pipeline_mode = #tpu.pipeline_mode<synchronous>, transform_indices = @transform_2, window_bounds = array<i64: 32, 128>}]} {
    %c0 = arith.constant 0 : index
    %c0_0 = arith.constant 0 : index
    %0 = vector.load %arg1[%c0, %c0_0] : memref<32x256xbf16, #tpu.memory_space<vmem>>, vector<32x256xbf16>
    %c0_1 = arith.constant 0 : index
    %c0_2 = arith.constant 0 : index
    %1 = vector.load %arg2[%c0_1, %c0_2] : memref<256x128xbf16, #tpu.memory_space<vmem>>, vector<256x128xbf16>
    %cst = arith.constant dense<0.000000e+00> : vector<32x128xf32>
    %2 = tpu.matmul %0, %1, %cst {dimension_numbers = #tpu.dot_dimension_numbers<[1], [0], [0], [1], [0, 0, 1, 1], [], []>} : vector<32x256xbf16>, vector<256x128xbf16>, vector<32x128xf32> -> vector<32x128xf32>
    %cst_3 = arith.constant 0.000000e+00 : f32
    %3 = vector.broadcast %cst_3 : f32 to vector<32x128xf32>
    %4 = arith.maximumf %2, %3 : vector<32x128xf32>
    %c0_4 = arith.constant 0 : index
    %c0_5 = arith.constant 0 : index
    %5 = vector.load %arg3[%c0_4, %c0_5] : memref<32x128xf32, #tpu.memory_space<vmem>>, vector<32x128xf32>
    tpu.vector_store %arg3[%c0_4, %c0_5], %4 {strides = array<i32>} : memref<32x128xf32, #tpu.memory_space<vmem>>, vector<32x128xf32>,
    return
  }
  func.func @transform_0(%arg0: i32) -> (i32, i32) {
    %c0_i32 = arith.constant 0 : i32
    %c0_i32_0 = arith.constant 0 : i32
    %c0_i32_1 = arith.constant 0 : i32
    return %c0_i32, %c0_i32_0 : i32, i32
  }
  func.func @transform_1(%arg0: i32) -> (i32, i32) {
    %c0_i32 = arith.constant 0 : i32
    %c0_i32_0 = arith.constant 0 : i32
    %c0_i32_1 = arith.constant 0 : i32
    return %c0_i32, %c0_i32_0 : i32, i32
  }
  func.func @transform_2(%arg0: i32) -> (i32, i32) {
    %c0_i32 = arith.constant 0 : i32
    %c0_i32_0 = arith.constant 0 : i32
    %c0_i32_1 = arith.constant 0 : i32
    return %c0_i32, %c0_i32_0 : i32, i32
  }
}

</mosaic_0001>

<llo_original>
// kernel: cnn_block_forward.1
$region0: #{cnn_block_forward.1}
  #allocation0 [shape = 'u32[]', space=smem, size = 0x4, offset = 0x4, fixed_abs, tag = 'smem constant byte address 0x4 - core index']
  #allocation1 [shape = 'u32[72,128]{1,0:T(1,128)}', space=vmem, size = 0x9000, scoped, tag = 'internal scratch']
  %s0 = inlined_call_operand.vmem [shape: bf16[32,256], index: 0, kind: input, shape index: {}]
  %s1 = inlined_call_operand.vmem [shape: bf16[256,128], index: 1, kind: input, shape index: {}]
  %s2 = inlined_call_operand.vmem [shape: f32[32,128], index: 2, kind: output, shape index: {}]
  %s3 = sld [smem:[#allocation0]]
  $region18: #{cnn_block_forward.1} parent=0
    _
  %s5 = ssub.s32 1, %s3
  %s6 = scalar_select 0, %s5, %s3
  // Predicated region
  $region2: #{cnn_block_forward.1} parent=0 // pred_check
    _
  $region3: #{cnn_block_forward.1} parent=0 // pred_check_branch
    %8 = sbr.rel (0) target = $region5
  $region4: #{cnn_block_forward.1} parent=0 // pred_region
    _
  $region5: #{cnn_block_forward.1} parent=0 // pred_fallthru
    _
  // Predicated region
  $region6: #{cnn_block_forward.1} parent=0 // pred_check
    _
  $region7: #{cnn_block_forward.1} parent=0 // pred_check_branch
    %10 = sbr.rel (0) target = $region9
  $region8: #{cnn_block_forward.1} parent=0 // pred_region
    _
  $region9: #{cnn_block_forward.1} parent=0 // pred_fallthru
    _
  %v11 = vld [vmem:[%s0] sm:$0xff]
  %v12 = vld [vmem:[%s0 + $0x8] sm:$0xff]
  %v13 = vld [vmem:[%s0 + $0x10] sm:$0xff]
  %v14 = vld [vmem:[%s0 + $0x18] sm:$0xff]
  %v15 = vld [vmem:[%s1] sm:$0xf]
  %v16 = vld [vmem:[%s1 + $0x4] sm:$0xf]
  %v17 = vld [vmem:[%s1 + $0x8] sm:$0xf]
  %v18 = vld [vmem:[%s1 + $0xc] sm:$0xf]
  %v19 = vld [vmem:[%s1 + $0x10] sm:$0xf]
  %v20 = vld [vmem:[%s1 + $0x14] sm:$0xf]
  %v21 = vld [vmem:[%s1 + $0x18] sm:$0xf]
  %v22 = vld [vmem:[%s1 + $0x1c] sm:$0xf]
  %v23 = vld [vmem:[%s1 + $0x20] sm:$0xf]
  %v24 = vld [vmem:[%s1 + $0x24] sm:$0xf]
  %v25 = vld [vmem:[%s1 + $0x28] sm:$0xf]
  %v26 = vld [vmem:[%s1 + $0x2c] sm:$0xf]
  %v27 = vld [vmem:[%s1 + $0x30] sm:$0xf]
  %v28 = vld [vmem:[%s1 + $0x34] sm:$0xf]
  %v29 = vld [vmem:[%s1 + $0x38] sm:$0xf]
  %v30 = vld [vmem:[%s1 + $0x3c] sm:$0xf]
  %v31 = vld [vmem:[%s1 + $0x40] sm:$0xf]
  %v32 = vld [vmem:[%s1 + $0x44] sm:$0xf]
  %v33 = vld [vmem:[%s1 + $0x48] sm:$0xf]
  %v34 = vld [vmem:[%s1 + $0x4c] sm:$0xf]
  %v35 = vld [vmem:[%s1 + $0x50] sm:$0xf]
  %v36 = vld [vmem:[%s1 + $0x54] sm:$0xf]
  %v37 = vld [vmem:[%s1 + $0x58] sm:$0xf]
  %v38 = vld [vmem:[%s1 + $0x5c] sm:$0xf]
  %v39 = vld [vmem:[%s1 + $0x60] sm:$0xf]
  %v40 = vld [vmem:[%s1 + $0x64] sm:$0xf]
  %v41 = vld [vmem:[%s1 + $0x68] sm:$0xf]
  %v42 = vld [vmem:[%s1 + $0x6c] sm:$0xf]
  %v43 = vld [vmem:[%s1 + $0x70] sm:$0xf]
  %v44 = vld [vmem:[%s1 + $0x74] sm:$0xf]
  %v45 = vld [vmem:[%s1 + $0x78] sm:$0xf]
  %v46 = vld [vmem:[%s1 + $0x7c] sm:$0xf]
  %v51 = vunpack.c.l.b16 %v11
  %v52 = vunpack.c.h.b16 %v11
  %v53 = vunpack.c.l.b16 %v12
  %v54 = vunpack.c.h.b16 %v12
  %v55 = vunpack.c.l.b16 %v13
  %v56 = vunpack.c.h.b16 %v13
  %v57 = vunpack.c.l.b16 %v14
  %v58 = vunpack.c.h.b16 %v14
  %v59 = vpack.c.b16 %v53, %v51
  %v60 = vpack.c.b16 %v54, %v52
  %v61 = vpack.c.b16 %v57, %v55
  %v62 = vpack.c.b16 %v58, %v56
  %v99 = vunpack.c.l.b16 %v15
  %v100 = vunpack.c.l.b16 %v16
  %v101 = vunpack.c.l.b16 %v17
  %v102 = vunpack.c.l.b16 %v18
  %v103 = vunpack.c.l.b16 %v19
  %v104 = vunpack.c.l.b16 %v20
  %v105 = vunpack.c.l.b16 %v21
  %v106 = vunpack.c.l.b16 %v22
  %v107 = vunpack.c.l.b16 %v23
  %v108 = vunpack.c.l.b16 %v24
  %v109 = vunpack.c.l.b16 %v25
  %v110 = vunpack.c.l.b16 %v26
  %v111 = vunpack.c.l.b16 %v27
  %v112 = vunpack.c.l.b16 %v28
  %v113 = vunpack.c.l.b16 %v29
  %v114 = vunpack.c.l.b16 %v30
  %v115 = vunpack.c.l.b16 %v31
  %v116 = vunpack.c.l.b16 %v32
  %v117 = vunpack.c.l.b16 %v33
  %v118 = vunpack.c.l.b16 %v34
  %v119 = vunpack.c.l.b16 %v35
  %v120 = vunpack.c.l.b16 %v36
  %v121 = vunpack.c.l.b16 %v37
  %v122 = vunpack.c.l.b16 %v38
  %v123 = vunpack.c.l.b16 %v39
  %v124 = vunpack.c.l.b16 %v40
  %v125 = vunpack.c.l.b16 %v41
  %v126 = vunpack.c.l.b16 %v42
  %v127 = vunpack.c.l.b16 %v43
  %v128 = vunpack.c.l.b16 %v44
  %v129 = vunpack.c.l.b16 %v45
  %v130 = vunpack.c.l.b16 %v46
  %v131 = vpack.c.b16 %v100, %v99
  %v132 = vpack.c.b16 %v102, %v101
  %v133 = vpack.c.b16 %v104, %v103
  %v134 = vpack.c.b16 %v106, %v105
  %v135 = vpack.c.b16 %v108, %v107
  %v136 = vpack.c.b16 %v110, %v109
  %v137 = vpack.c.b16 %v112, %v111
  %v138 = vpack.c.b16 %v114, %v113
  %v139 = vpack.c.b16 %v116, %v115
  %v140 = vpack.c.b16 %v118, %v117
  %v141 = vpack.c.b16 %v120, %v119
  %v142 = vpack.c.b16 %v122, %v121
  %v143 = vpack.c.b16 %v124, %v123
  %v144 = vpack.c.b16 %v126, %v125
  %v145 = vpack.c.b16 %v128, %v127
  %v146 = vpack.c.b16 %v130, %v129
  %163 = vmatpush.bf16.msra.mxu0 %v138
  %164 = vmatpush.bf16.msra.mxu0 %v137
  %165 = vmatpush.bf16.msra.mxu0 %v136
  %166 = vmatpush.bf16.msra.mxu0 %v135
  %167 = vmatpush.bf16.msra.mxu0 %v134
  %168 = vmatpush.bf16.msra.mxu0 %v133
  %169 = vmatpush.bf16.msra.mxu0 %v132
  %170 = vmatpush.bf16.msra.mxu0 %v131
  %171 = vmatmul.bf16.gmra.mxu0 %v59
  %v172 = vpop.f32.mrf.mxu0
  %v173 = vadd.f32 0.0, %v172
  %v174 = vpop.f32.mrf.mxu0
  %v175 = vadd.f32 0.0, %v174
  %176 = vmatmul.bf16.gmra.mxu0 %v61
  %v177 = vpop.f32.mrf.mxu0
  %v178 = vadd.f32 0.0, %v177
  %v179 = vpop.f32.mrf.mxu0
  %v180 = vadd.f32 0.0, %v179
  %181 = vdwg.mxu0
  %182 = vmatpush.bf16.msra.mxu0 %v146
  %183 = vmatpush.bf16.msra.mxu0 %v145
  %184 = vmatpush.bf16.msra.mxu0 %v144
  %185 = vmatpush.bf16.msra.mxu0 %v143
  %186 = vmatpush.bf16.msra.mxu0 %v142
  %187 = vmatpush.bf16.msra.mxu0 %v141
  %188 = vmatpush.bf16.msra.mxu0 %v140
  %189 = vmatpush.bf16.msra.mxu0 %v139
  %190 = vmatmul.bf16.gmra.mxu0 %v60
  %v191 = vpop.f32.mrf.mxu0
  %v192 = vadd.f32 %v173, %v191
  %v193 = vpop.f32.mrf.mxu0
  %v194 = vadd.f32 %v175, %v193
  %195 = vmatmul.bf16.gmra.mxu0 %v62
  %v196 = vpop.f32.mrf.mxu0
  %v197 = vadd.f32 %v178, %v196
  %v198 = vpop.f32.mrf.mxu0
  %v199 = vadd.f32 %v180, %v198
  %200 = vdwg.mxu0
  %v201 = vmax.f32 %v192, 0.0
  %v202 = vmax.f32 %v194, 0.0
  %v203 = vmax.f32 %v197, 0.0
  %v204 = vmax.f32 %v199, 0.0
  %205 = vst [vmem:[%s2] sm:$0xff] %v201
  %206 = vst [vmem:[%s2 + $0x8] sm:$0xff] %v202
  %207 = vst [vmem:[%s2 + $0x10] sm:$0xff] %v203
  %208 = vst [vmem:[%s2 + $0x18] sm:$0xff] %v204
  // Predicated region
  $region10: #{cnn_block_forward.1} parent=0 // pred_check
    _
  $region11: #{cnn_block_forward.1} parent=0 // pred_check_branch
    %210 = sbr.rel (0) target = $region13
  $region12: #{cnn_block_forward.1} parent=0 // pred_region
    _
  $region13: #{cnn_block_forward.1} parent=0 // pred_fallthru
    _
  // Predicated region
  $region14: #{cnn_block_forward.1} parent=0 // pred_check
    _
  $region15: #{cnn_block_forward.1} parent=0 // pred_check_branch
    %212 = sbr.rel (0) target = $region17
  $region16: #{cnn_block_forward.1} parent=0 // pred_region
    _
  $region17: #{cnn_block_forward.1} parent=0 // pred_fallthru
    _

</llo_original>
